<compile_context>
chip_gen: v5e
topology: v5e:2x2
jax: 0.10.0
libtpu: 0.0.40
codegen_flags: <defaults>
</compile_context>

<pallas_src>
import jax
import jax.numpy as jnp
from jax.experimental import pallas as pl
from jax.experimental.pallas import tpu as pltpu


def _round_up(x, m):
    return (x + m - 1) // m * m


def _divisors(n):
    return [d for d in range(1, n + 1) if n % d == 0]


# ---------------------------------------------------------------------------
# Kernels
# ---------------------------------------------------------------------------

def _extend_rows_kernel(color_ref, fd_ref, out_ref):
    """Primary (flattened, row-tiled) path.

    color_ref : VMEM (tbn, C*H*W)        original channels, flattened per (b, n) row
    fd_ref    : VMEM (rows, 1) float32   resident focus distances (whole array, DMA'd once)
    out_ref   : VMEM (tbn, (C+1)*H*W)    [original channels | focus-dist plane]
    """
    tbn, chw = color_ref.shape
    hw = out_ref.shape[1] - chw

    # Lane-aligned slab copy of the original C channels.
    out_ref[:, :chw] = color_ref[...]

    # Per-row focus distance: slice the resident block, cast the (tbn, 1) vector (not the
    # (tbn, hw) slab), then lane-broadcast on the VPU.
    r0 = pl.program_id(0) * tbn
    if tbn % 8 == 0:
        r0 = pl.multiple_of(r0, 8)
    fd = fd_ref[pl.ds(r0, tbn), :].astype(out_ref.dtype)          # (tbn, 1)
    out_ref[:, chw:] = jnp.broadcast_to(fd, (tbn, hw))


def _extend_rows_cols_kernel(color_ref, fd_ref, out_ref):
    """Fallback path for very large H*W: row x column tiling on 3-D blocks.

    color_ref : VMEM (tbn, C, tcol)
    fd_ref    : VMEM (rows, 1) float32   resident
    out_ref   : VMEM (tbn, C+1, tcol)
    """
    tbn, num_ch, tcol = color_ref.shape

    out_ref[:, :num_ch, :] = color_ref[...]

    r0 = pl.program_id(0) * tbn
    if tbn % 8 == 0:
        r0 = pl.multiple_of(r0, 8)
    fd = fd_ref[pl.ds(r0, tbn), :].astype(out_ref.dtype)          # (tbn, 1)
    out_ref[:, num_ch:, :] = jnp.broadcast_to(fd[:, :, None], (tbn, 1, tcol))


# ---------------------------------------------------------------------------
# Tile selection (VMEM budgeting on the total double-buffered footprint)
# ---------------------------------------------------------------------------

def _choose_row_tile(rows, pair_row_bytes, sublane_pack, budget, fd_bytes):
    """Row tile for the flattened path, or None if no legal tile fits the budget.

    pair_row_bytes : bytes of ONE row of (input tile + output tile), lane-padded.
    Legality       : tbn % 8 == 0 or tbn == rows  ((8,128) rule on the second-minor dim).
    Preference     : >= 2 (ideally even) grid steps when rows >= 16 (v7x megacore),
                     dtype-aware sublane alignment, then the largest tile.
    """
    def fits(d):
        return 2 * (d * pair_row_bytes + fd_bytes) <= budget

    cands = [d for d in _divisors(rows) if (d % 8 == 0 or d == rows) and fits(d)]
    if not cands:
        return None

    def rank(d):
        steps = rows // d
        multi_step = (rows < 16) or steps >= 2
        even_split = (rows < 16) or (steps >= 2 and steps % 2 == 0)
        aligned = (d % sublane_pack == 0) or (d == rows)
        return (multi_step, even_split, aligned, d)

    return max(cands, key=rank)


def _choose_row_col_tiles(rows, num_ch, hw, itemsize, sublane_pack, budget, fd_bytes):
    """(tbn, tcol) for the fallback 2-D-tiled path."""
    pad_in = _round_up(num_ch, sublane_pack)        # sublane padding of the (C, tcol) tile
    pad_out = _round_up(num_ch + 1, sublane_pack)

    def fits(tbn, tcol):
        per_set = tbn * (pad_in + pad_out) * _round_up(tcol, 128) * itemsize
        return 2 * (per_set + fd_bytes) <= budget

    # 128-aligned divisors of hw (plus hw itself, which is always a legal full-extent block).
    col_cands = sorted({c for c in range(128, hw + 1, 128) if hw % c == 0} | {hw})
    tcol = col_cands[0]
    for c in col_cands:                             # largest column tile that fits with tbn=1
        if fits(1, c):
            tcol = c

    tbn = 1
    for d in _divisors(rows):                       # then the largest row tile that still fits
        if fits(d, tcol):
            tbn = d
    return tbn, tcol


# ---------------------------------------------------------------------------
# Wrapper
# ---------------------------------------------------------------------------

def extend_data_focus_dist(color, focus_dist_all, *,
                           vmem_budget_bytes=12 << 20, force_column_tiling=False):
    """color: [B, N, C, H, W]; focus_dist_all: [B, N]  ->  [B, N, C+1, H, W]."""
    B, N, C, H, W = color.shape
    rows = B * N
    hw = H * W
    chw = C * hw
    out_row = chw + hw
    dtype = color.dtype
    itemsize = jnp.dtype(dtype).itemsize
    sublane_pack = 8 * max(1, 4 // itemsize)        # 8 f32 / 16 bf16 / 32 int8|fp8

    fd = focus_dist_all.reshape(rows, 1).astype(jnp.float32)     # f32 until the in-kernel cast
    # Resident (rows, 1) f32 block, conservatively costed as (8,128)-padded tiles.
    fd_bytes = _round_up(rows, 8) * 128 * 4

    tbn = None
    if not force_column_tiling:
        pair_row_bytes = (_round_up(chw, 128) + _round_up(out_row, 128)) * itemsize
        tbn = _choose_row_tile(rows, pair_row_bytes, sublane_pack, vmem_budget_bytes, fd_bytes)

    if tbn is not None:
        # Primary path: flattened rows, 1-D grid.
        out_flat = pl.pallas_call(
            _extend_rows_kernel,
            out_shape=jax.ShapeDtypeStruct((rows, out_row), dtype),
            grid=(rows // tbn,),
            in_specs=[
                pl.BlockSpec((tbn, chw), lambda i: (i, 0)),
                pl.BlockSpec((rows, 1), lambda i: (0, 0)),       # resident: DMA'd once
            ],
            out_specs=pl.BlockSpec((tbn, out_row), lambda i: (i, 0)),
            compiler_params=pltpu.CompilerParams(
                dimension_semantics=("parallel",),               # independent rows -> 2 TCs on v7x
            ),
        )(color.reshape(rows, chw), fd)
        return out_flat.reshape(B, N, C + 1, H, W)

    # Fallback: 2-D (row x 128-aligned column) tiling on 3-D blocks for very large H*W.
    tbn, tcol = _choose_row_col_tiles(rows, C, hw, itemsize, sublane_pack,
                                      vmem_budget_bytes, fd_bytes)
    out_3d = pl.pallas_call(
        _extend_rows_cols_kernel,
        out_shape=jax.ShapeDtypeStruct((rows, C + 1, hw), dtype),
        grid=(rows // tbn, hw // tcol),
        in_specs=[
            pl.BlockSpec((tbn, C, tcol), lambda i, j: (i, 0, j)),
            pl.BlockSpec((rows, 1), lambda i, j: (0, 0)),        # resident: DMA'd once
        ],
        out_specs=pl.BlockSpec((tbn, C + 1, tcol), lambda i, j: (i, 0, j)),
        compiler_params=pltpu.CompilerParams(
            dimension_semantics=("parallel", "parallel"),
        ),
    )(color.reshape(rows, C, hw), fd)
    return out_3d.reshape(B, N, C + 1, H, W)


def forward(data):
    """Mirrors ExtendDataFocusDist.forward: extends data['color'] with a focus-dist channel."""
    data = dict(data)  # dict bookkeeping stays in plain Python/JAX
    data["color"] = extend_data_focus_dist(data["color"], data["focus_dist_all"])
    return data


if __name__ == "__main__":
    key = jax.random.PRNGKey(0)
    k_color, k_fd = jax.random.split(key)

    # Small shapes consistent with the module: B=2 batches, N=4 focal-stack images,
    # C=3 color channels, 16x16 spatial.
    B, N, C, H, W = 2, 4, 3, 16, 16
    color = jax.random.normal(k_color, (B, N, C, H, W), dtype=jnp.float32)
    focus_dist_all = jax.random.uniform(
        k_fd, (B, N), dtype=jnp.float32, minval=0.1, maxval=2.0
    )

    # Reference (plain JAX, same semantics as the PyTorch module).
    expected = jnp.concatenate(
        [
            color,
            jnp.broadcast_to(
                focus_dist_all[:, :, None, None, None], (B, N, 1, H, W)
            ).astype(color.dtype),
        ],
        axis=2,
    )

    # Primary (flattened, row-tiled) path.
    data = {"color": color, "focus_dist_all": focus_dist_all}
    out = forward(data)
    result = jax.block_until_ready(out["color"])
    assert result.shape == (B, N, C + 1, H, W), result.shape
    assert result.dtype == color.dtype
    assert jnp.allclose(result, expected), "flattened-path output mismatch vs reference"

    # Exercise the large-image fallback (2-D row x column tiling) at the same small shape by
    # forcing it with a tiny VMEM budget (-> tbn=1, tcol=128, grid=(8, 2)).
    result_2d = jax.block_until_ready(
        extend_data_focus_dist(color, focus_dist_all,
                               vmem_budget_bytes=24 << 10, force_column_tiling=True)
    )
    assert jnp.allclose(result_2d, expected), "column-tiled-path output mismatch vs reference"

    print("KERNEL_OK")
</pallas_src>

<mosaic_0001>
module attributes {stable_mosaic.version = 11 : i64} {
  func.func @_extend_rows_kernel(%arg0: i32, %arg1: memref<8x768xf32, #tpu.memory_space<vmem>>, %arg2: memref<8x1xf32, #tpu.memory_space<vmem>>, %arg3: memref<8x1024xf32, #tpu.memory_space<vmem>>) attributes {dimension_semantics = [#tpu.dimension_semantics<parallel>], iteration_bounds = array<i64: 1>, scalar_prefetch = 0 : i64, scratch_operands = 0 : i64, tpu.core_type = #tpu.core_type<tc>, window_params = [{transform_indices = @transform_0, window_bounds = array<i64: 8, 768>}, {pipeline_mode = #tpu.pipeline_mode<synchronous>, transform_indices = @transform_1, window_bounds = array<i64: 8, 1>}, {transform_indices = @transform_2, window_bounds = array<i64: 8, 1024>}]} {
    %c0 = arith.constant 0 : index
    %c0_0 = arith.constant 0 : index
    %0 = vector.load %arg1[%c0, %c0_0] : memref<8x768xf32, #tpu.memory_space<vmem>>, vector<8x768xf32>
    %c0_1 = arith.constant 0 : index
    %c0_2 = arith.constant 0 : index
    %1 = vector.load %arg3[%c0_1, %c0_2] : memref<8x1024xf32, #tpu.memory_space<vmem>>, vector<8x768xf32>
    tpu.vector_store %arg3[%c0_1, %c0_2], %0 {strides = array<i32>} : memref<8x1024xf32, #tpu.memory_space<vmem>>, vector<8x768xf32>,
    %c8_i32 = arith.constant 8 : i32
    %2 = arith.muli %arg0, %c8_i32 : i32
    %3 = tpu.assume_multiple %2, 8 : i32
    %4 = arith.index_cast %3 : i32 to index
    %c0_3 = arith.constant 0 : index
    %5 = vector.load %arg2[%4, %c0_3] : memref<8x1xf32, #tpu.memory_space<vmem>>, vector<8x1xf32>
    %6 = vector.shape_cast %5 : vector<8x1xf32> to vector<8x1xf32>
    %7 = vector.broadcast %6 : vector<8x1xf32> to vector<8x256xf32>
    %c0_4 = arith.constant 0 : index
    %c768 = arith.constant 768 : index
    %8 = vector.load %arg3[%c0_4, %c768] : memref<8x1024xf32, #tpu.memory_space<vmem>>, vector<8x256xf32>
    tpu.vector_store %arg3[%c0_4, %c768], %7 {strides = array<i32>} : memref<8x1024xf32, #tpu.memory_space<vmem>>, vector<8x256xf32>,
    return
  }
  func.func @transform_0(%arg0: i32) -> (i32, i32) {
    %c0_i32 = arith.constant 0 : i32
    %c0_i32_0 = arith.constant 0 : i32
    return %arg0, %c0_i32 : i32, i32
  }
  func.func @transform_1(%arg0: i32) -> (i32, i32) {
    %c0_i32 = arith.constant 0 : i32
    %c0_i32_0 = arith.constant 0 : i32
    %c0_i32_1 = arith.constant 0 : i32
    return %c0_i32, %c0_i32_0 : i32, i32
  }
  func.func @transform_2(%arg0: i32) -> (i32, i32) {
    %c0_i32 = arith.constant 0 : i32
    %c0_i32_0 = arith.constant 0 : i32
    return %arg0, %c0_i32 : i32, i32
  }
}

</mosaic_0001>

<llo_original>
// kernel: tpu_custom_call.1
$region0: #{tpu_custom_call.1}
  #allocation0 [shape = 'u32[]', space=smem, size = 0x4, offset = 0x4, fixed_abs, tag = 'smem constant byte address 0x4 - core index']
  #allocation1 [shape = 'u32[72,128]{1,0:T(1,128)}', space=vmem, size = 0x9000, scoped, tag = 'internal scratch']
  %s0 = inlined_call_operand.hbm [shape: f32[8,768], index: 0, kind: input, shape index: {}]
  %s1 = inlined_call_operand.vmem [shape: f32[8,1], index: 1, kind: input, shape index: {}]
  %s2 = inlined_call_operand.hbm [shape: f32[8,1024], index: 2, kind: output, shape index: {}]
  %s3 = sld [smem:[#allocation0]]
  $region22: #{tpu_custom_call.1} parent=0
    _
  %s5 = ssub.s32 1, %s3
  %s6 = scalar_select 0, %s5, %s3
  $region1: #{tpu_custom_call.1} parent=0
    #allocation2 [shape = 'u8[24576]{0}', space=vmem, size = 0x6000, scoped, tag = 'input window, operand 0, single buffered']
    #allocation3 [shape = 's32[1]{0}', space=sflag, size = 0x4, scoped, tag = 'scoped memory for tpu_custom_call.1']
    #allocation4 [shape = 's32[1]{0}', space=sflag, size = 0x4, scoped, tag = 'scoped memory for tpu_custom_call.1']
    #allocation5 [shape = 'u8[32768]{0}', space=vmem, size = 0x8000, scoped, tag = 'output window, operand 0, single buffered']
    %7 = vsyncpa [#allocation3], 0
    %8 = vsyncpa [#allocation4], 0
    // Predicated region
    $region2: #{tpu_custom_call.1} parent=1 // pred_check
      _
    $region3: #{tpu_custom_call.1} parent=1 // pred_check_branch
      %10 = sbr.rel (0) target = $region5
    $region4: #{tpu_custom_call.1} parent=1 // pred_region
      %12 = vsyncadd [#allocation3], 0
      %s14 = sshll.u32 %s0, 4
      %s15 = int_to_ptr.hbm [resolvable:$true] %s14
      %s16 = sshll.u32 [#allocation2], 4
      %s17 = int_to_ptr.vmem [resolvable:$true] %s16
      %19 = dma.hbm_to_vmem [thread:$0]  %s15, 768, %s17, [#allocation3]
    $region5: #{tpu_custom_call.1} parent=1 // pred_fallthru
      _
    // Predicated region
    $region6: #{tpu_custom_call.1} parent=1 // pred_check
      _
    $region7: #{tpu_custom_call.1} parent=1 // pred_check_branch
      %21 = sbr.rel (0) target = $region9
    $region8: #{tpu_custom_call.1} parent=1 // pred_region
      _
    $region9: #{tpu_custom_call.1} parent=1 // pred_fallthru
      _
    // Predicated region
    $region10: #{tpu_custom_call.1} parent=1 // pred_check
      _
    $region11: #{tpu_custom_call.1} parent=1 // pred_check_branch
      %23 = sbr.rel (0) target = $region13
    $region12: #{tpu_custom_call.1} parent=1 // pred_region
      %25 = dma.done [#allocation3], 768
    $region13: #{tpu_custom_call.1} parent=1 // pred_fallthru
      _
    %v26 = vld [vmem:[#allocation2] sm:$0xff]
    %v27 = vld [vmem:[#allocation2 + $0x8] sm:$0xff]
    %v28 = vld [vmem:[#allocation2 + $0x10] sm:$0xff]
    %v29 = vld [vmem:[#allocation2 + $0x18] sm:$0xff]
    %v30 = vld [vmem:[#allocation2 + $0x20] sm:$0xff]
    %v31 = vld [vmem:[#allocation2 + $0x28] sm:$0xff]
    %32 = vst [vmem:[#allocation5] sm:$0xff] %v26
    %33 = vst [vmem:[#allocation5 + $0x8] sm:$0xff] %v27
    %34 = vst [vmem:[#allocation5 + $0x10] sm:$0xff] %v28
    %35 = vst [vmem:[#allocation5 + $0x18] sm:$0xff] %v29
    %36 = vst [vmem:[#allocation5 + $0x20] sm:$0xff] %v30
    %37 = vst [vmem:[#allocation5 + $0x28] sm:$0xff] %v31
    %s38 = smul.u32 0, 8
    %s39 = scalar_lea.vmem %s1, %s38
    %v40 = vld [vmem:[%s39] sm:$0xff]
    %42 = vset.pattern.permute.xlu0 0
    %43 = vperm.xlu0 %42, %v40
    %v44 = vpop.permute.xlu0 %43
    %46 = vst [vmem:[#allocation5 + $0x30] sm:$0xff] %v44
    %47 = vst [vmem:[#allocation5 + $0x38] sm:$0xff] %v44
    // Predicated region
    $region14: #{tpu_custom_call.1} parent=1 // pred_check
      _
    $region15: #{tpu_custom_call.1} parent=1 // pred_check_branch
      %49 = sbr.rel (0) target = $region17
    $region16: #{tpu_custom_call.1} parent=1 // pred_region
      %51 = vsyncadd [#allocation4], 0
      %s53 = sshll.u32 [#allocation5], 4
      %s54 = int_to_ptr.vmem [resolvable:$true] %s53
      %s55 = sshll.u32 %s2, 4
      %s56 = int_to_ptr.hbm [resolvable:$true] %s55
      %58 = dma.vmem_to_hbm [thread:$0]  %s54, 1024, %s56, [#allocation4]
    $region17: #{tpu_custom_call.1} parent=1 // pred_fallthru
      _
    // Predicated region
    $region18: #{tpu_custom_call.1} parent=1 // pred_check
      _
    $region19: #{tpu_custom_call.1} parent=1 // pred_check_branch
      %60 = sbr.rel (0) target = $region21
    $region20: #{tpu_custom_call.1} parent=1 // pred_region
      %62 = dma.done [#allocation4], 1024
    $region21: #{tpu_custom_call.1} parent=1 // pred_fallthru
      _
    %63 = vsyncpa [#allocation3], 1
    %64 = vsyncpa [#allocation4], 1

</llo_original>
